<compile_context>
chip_gen: v7x
topology: tpu7x:2x2x1
jax: 0.10.0
libtpu: 0.0.40
codegen_flags: <defaults>
</compile_context>

<pallas_src>
import jax
import jax.numpy as jnp
import numpy as np
from jax.experimental import pallas as pl
from jax.experimental.pallas import tpu as pltpu


def _round_up(x, m):
    return (x + m - 1) // m * m


def _make_kernel(nv):
    """Kernel factory. Grid = (batch_tiles, 2*nv); vocab axis is two sweeps."""

    def kernel(pooled_ref,   # VMEM (TM, D)   mean-pooled embeddings (weight dtype)
               w_ref,        # VMEM (D, TV)   pre-transposed Linear weight tile
               b_ref,        # VMEM (1, TV)   Linear bias tile (f32)
               out_ref,      # VMEM (TM, TV)  streamed log-prob output tile
               m_ref,        # VMEM (TM, 1)   running max  -> logsumexp after fold
               l_ref):       # VMEM (TM, 1)   running sum(exp)
        v = pl.program_id(1)

        @pl.when(v == 0)
        def _init():
            m_ref[...] = jnp.full_like(m_ref, -jnp.inf)
            l_ref[...] = jnp.zeros_like(l_ref)

        # Canonical MXU matmul: (TM, D) @ (D, TV) -> (TM, TV), f32 accumulate.
        logits = jnp.dot(pooled_ref[...], w_ref[...],
                         preferred_element_type=jnp.float32) + b_ref[...]

        # Sweep 1: online (cross-tile) logsumexp.
        @pl.when(v < nv)
        def _sweep1():
            m_old = m_ref[...]
            m_new = jnp.maximum(m_old, jnp.max(logits, axis=-1, keepdims=True))
            l_ref[...] = (l_ref[...] * jnp.exp(m_old - m_new)
                          + jnp.sum(jnp.exp(logits - m_new), axis=-1, keepdims=True))
            m_ref[...] = m_new

        # Fold running (max, sum) into logsumexp at the end of sweep 1.
        @pl.when(v == nv - 1)
        def _fold():
            m_ref[...] = m_ref[...] + jnp.log(l_ref[...])

        # Sweep 2: recompute the (cheap) logits tile and write it normalized,
        # lane-dense, straight into the streamed output block.
        @pl.when(v >= nv)
        def _sweep2():
            out_ref[...] = logits - m_ref[...]

    return kernel


def paragraph2vec_dm_forward_batched(context_ids, item_ids, negative_samples_ids,
                                     item_table, ctx_table, out_w, out_b,
                                     *, tv=None, tm=256):
    """Batched PV-DM forward.

    context_ids: (B, C) int, item_ids: (B,) int. out_w is in PyTorch (V, D) layout,
    f32 or bf16 (bf16 halves the streamed weight bytes; accumulation stays f32).
    Returns (B, V) float32 log-probs.
    """
    del negative_samples_ids  # unused by the PyTorch forward as well

    context_ids = jnp.asarray(context_ids, jnp.int32)
    item_ids = jnp.asarray(item_ids, jnp.int32)
    B, C = context_ids.shape
    V, D = out_w.shape
    lane = 128

    compute_dtype = jnp.bfloat16 if out_w.dtype == jnp.bfloat16 else jnp.float32
    w_bytes = 2 if compute_dtype == jnp.bfloat16 else 4

    # --- Wrapper-side gather + mean pool (tables never enter the kernel/VMEM) ---
    item_rows = jnp.take(item_table, item_ids, axis=0).astype(jnp.float32)       # (B, D)
    ctx_rows = jnp.take(ctx_table, context_ids.reshape(-1), axis=0)
    ctx_rows = ctx_rows.astype(jnp.float32).reshape(B, C, D)                     # (B, C, D)
    pooled = (item_rows + jnp.sum(ctx_rows, axis=1)) / float(C + 1)              # (B, D)
    pooled = pooled.astype(compute_dtype)

    # --- Tiling ---
    tm_eff = min(tm, _round_up(B, 8))
    b_pad = _round_up(B, tm_eff)
    # Keep >=2 batch tiles when the batch allows (v7x: 2 TensorCores on "parallel").
    if b_pad // tm_eff < 2 and b_pad >= 16:
        tm_eff = _round_up(b_pad // 2, 8)
        b_pad = _round_up(B, tm_eff)

    if tv is None:
        tv = 2048
        # Keep the double-buffered W tile + output tile comfortably inside VMEM.
        while tv > 128 and 2 * (D * tv * w_bytes + tm_eff * tv * 4) > 24 * 1024 * 1024:
            tv //= 2
    tv = _round_up(min(tv, _round_up(V, lane)), lane)
    v_pad = _round_up(V, tv)
    nv = v_pad // tv
    nb = b_pad // tm_eff

    # --- Pad operands ---
    pooled = jnp.pad(pooled, ((0, b_pad - B), (0, 0)))                           # (b_pad, D)
    # Pre-transpose ONCE to (D, V): lane-dense (D, TV) tiles feed the MXU directly.
    w_t = jnp.pad(out_w.astype(compute_dtype).T, ((0, 0), (0, v_pad - V)))       # (D, v_pad)
    # Padded vocab lanes get bias -1e30 so exp() underflows to 0 in the logsumexp.
    b2d = jnp.pad(out_b.astype(jnp.float32).reshape(1, V),
                  ((0, 0), (0, v_pad - V)), constant_values=-1e30)               # (1, v_pad)

    # --- VMEM budget from the actual tile footprint (stays well under v7x's 64 MiB) ---
    usage = (2 * (D * tv * w_bytes)                 # W tile, double-buffered
             + 2 * (tm_eff * tv * 4)                # output tile, double-buffered
             + 2 * (8 * tv * 4)                     # bias tile (sublane-padded)
             + 2 * (tm_eff * max(D, lane) * 4)      # pooled tile
             + 2 * (tm_eff * lane * 4))             # (TM,1) scratch, lane-padded
    vmem_limit = int(min(max(3 * usage, 16 * 1024 * 1024), 100 * 1024 * 1024))

    kernel = _make_kernel(nv)

    out = pl.pallas_call(
        kernel,
        out_shape=jax.ShapeDtypeStruct((b_pad, v_pad), jnp.float32),
        grid=(nb, 2 * nv),
        in_specs=[
            # Pooled embeddings: constant across the vocab axis (fetched per batch tile).
            pl.BlockSpec((tm_eff, D), lambda b, v: (b, 0)),
            # Weight streamed in (D, TV) tiles; the same tile sequence on both sweeps.
            pl.BlockSpec((D, tv), lambda b, v: (0, jnp.where(v < nv, v, v - nv))),
            # Bias tile.
            pl.BlockSpec((1, tv), lambda b, v: (0, jnp.where(v < nv, v, v - nv))),
        ],
        # Output is STREAMED per (TM, TV) tile. During sweep 1 it parks on tile 0
        # (no writes happen there); its only write-back occurs after sweep 2 has
        # written the normalized values, so VMEM stays O(TM*TV), not O(TM*V).
        out_specs=pl.BlockSpec((tm_eff, tv),
                               lambda b, v: (b, jnp.where(v < nv, 0, v - nv))),
        scratch_shapes=[
            pltpu.VMEM((tm_eff, 1), jnp.float32),   # running max -> logsumexp
            pltpu.VMEM((tm_eff, 1), jnp.float32),   # running sum(exp)
        ],
        compiler_params=pltpu.CompilerParams(
            dimension_semantics=("parallel", "arbitrary"),
            vmem_limit_bytes=vmem_limit),
    )(pooled, w_t, b2d)

    return out[:B, :V]


def paragraph2vec_dm_forward(context_ids, item_id, negative_samples_ids,
                             item_table, ctx_table, out_w, out_b, *, tv=None, tm=256):
    """Single-example wrapper matching Paragraph2Vec_DM.forward -> (1, V) log-probs."""
    ctx = jnp.asarray(context_ids, jnp.int32).reshape(1, -1)
    iid = jnp.asarray(item_id, jnp.int32).reshape(1)
    return paragraph2vec_dm_forward_batched(
        ctx, iid, negative_samples_ids,
        item_table, ctx_table, out_w, out_b, tv=tv, tm=tm)


def _reference_forward(context_ids, item_id, item_table, ctx_table, out_w, out_b):
    """Pure-JAX reference matching the PyTorch module (f32)."""
    item_emb = item_table[item_id][None, :]                  # (1, D)
    ctx_emb = ctx_table[context_ids]                         # (C, D)
    total = jnp.concatenate([item_emb, ctx_emb], axis=0)     # (C+1, D)
    mean = jnp.mean(total, axis=0, keepdims=True)            # (1, D)
    logits = mean @ out_w.T + out_b                          # (1, V)
    return jax.nn.log_softmax(logits, axis=-1)


if __name__ == "__main__":
    # Small, module-consistent sizes; vocab > 128 so the vocab tiling / two-sweep
    # online log-softmax path is exercised (3 vocab tiles at tv=128).
    embed_dim = 32
    total_items = 50
    total_words = 384
    num_context = 7
    num_negatives = 5
    batch = 12

    key = jax.random.PRNGKey(0)
    (k_item, k_word, k_w, k_b, k_cid, k_iid,
     k_neg, k_cidb, k_iidb) = jax.random.split(key, 9)

    # Parameter init mirroring the module's __init__ ranges.
    item_range = (2.0 / (total_items + embed_dim)) ** 0.5
    word_range = (2.0 / (total_words + embed_dim)) ** 0.5
    item_table = jax.random.uniform(
        k_item, (total_items, embed_dim), jnp.float32, -item_range, item_range)
    ctx_table = jax.random.uniform(
        k_word, (total_words, embed_dim), jnp.float32, -word_range, word_range)
    # nn.Linear(embed_dim, total_words): weight (V, D), bias (V,)
    lin_bound = 1.0 / float(embed_dim) ** 0.5
    out_w = jax.random.uniform(
        k_w, (total_words, embed_dim), jnp.float32, -lin_bound, lin_bound)
    out_b = jax.random.uniform(
        k_b, (total_words,), jnp.float32, -lin_bound, lin_bound)

    # Example inputs.
    context_ids = jax.random.randint(k_cid, (num_context,), 0, total_words, jnp.int32)
    item_id = jax.random.randint(k_iid, (), 0, total_items, jnp.int32)
    negative_samples_ids = jax.random.randint(
        k_neg, (num_negatives,), 0, total_words, jnp.int32)   # unused by forward
    ctx_batch = jax.random.randint(k_cidb, (batch, num_context), 0, total_words, jnp.int32)
    item_batch = jax.random.randint(k_iidb, (batch,), 0, total_items, jnp.int32)

    # 1) Single example, f32 weights, tv=128 (3 vocab tiles, 2 sweeps) — strict check.
    out1 = paragraph2vec_dm_forward(
        context_ids, item_id, negative_samples_ids,
        item_table, ctx_table, out_w, out_b, tv=128)
    out1 = jax.block_until_ready(out1)
    ref1 = _reference_forward(context_ids, item_id, item_table, ctx_table, out_w, out_b)
    np.testing.assert_allclose(np.asarray(out1), np.asarray(ref1), rtol=1e-5, atol=1e-5)

    # 2) Batched, default tiles (single vocab tile, >=2 batch tiles) — strict check.
    ref2 = jax.vmap(
        lambda c, i: _reference_forward(c, i, item_table, ctx_table, out_w, out_b)[0]
    )(ctx_batch, item_batch)
    out2 = paragraph2vec_dm_forward_batched(
        ctx_batch, item_batch, negative_samples_ids,
        item_table, ctx_table, out_w, out_b)
    out2 = jax.block_until_ready(out2)
    np.testing.assert_allclose(np.asarray(out2), np.asarray(ref2), rtol=1e-5, atol=1e-5)

    # 3) Batched with small explicit tiles (2 batch tiles x 3 vocab tiles) — strict check.
    out3 = paragraph2vec_dm_forward_batched(
        ctx_batch, item_batch, negative_samples_ids,
        item_table, ctx_table, out_w, out_b, tv=128, tm=8)
    out3 = jax.block_until_ready(out3)
    np.testing.assert_allclose(np.asarray(out3), np.asarray(ref2), rtol=1e-5, atol=1e-5)

    # 4) bf16 weight streaming (f32 accumulate) — relaxed tolerance vs f32 reference.
    out4 = paragraph2vec_dm_forward(
        context_ids, item_id, negative_samples_ids,
        item_table, ctx_table, out_w.astype(jnp.bfloat16), out_b, tv=128)
    out4 = jax.block_until_ready(out4)
    np.testing.assert_allclose(np.asarray(out4), np.asarray(ref1), rtol=5e-3, atol=5e-3)

    print("KERNEL_OK")
</pallas_src>

<mosaic_0001>
module attributes {stable_mosaic.version = 11 : i64} {
  func.func @kernel(%arg0: i32, %arg1: i32, %arg2: memref<8x32xf32, #tpu.memory_space<vmem>>, %arg3: memref<32x128xf32, #tpu.memory_space<vmem>>, %arg4: memref<1x128xf32, #tpu.memory_space<vmem>>, %arg5: memref<8x128xf32, #tpu.memory_space<vmem>>, %arg6: memref<8x1xf32, #tpu.memory_space<vmem>>, %arg7: memref<8x1xf32, #tpu.memory_space<vmem>>) attributes {dimension_semantics = [#tpu.dimension_semantics<parallel>, #tpu.dimension_semantics<arbitrary>], iteration_bounds = array<i64: 1, 6>, scalar_prefetch = 0 : i64, scratch_operands = 2 : i64, tpu.core_type = #tpu.core_type<tc>, window_params = [{transform_indices = @transform_0, window_bounds = array<i64: 8, 32>}, {transform_indices = @transform_1, window_bounds = array<i64: 32, 128>}, {transform_indices = @transform_2, window_bounds = array<i64: 1, 128>}, {transform_indices = @transform_3, window_bounds = array<i64: 8, 128>}]} {
    %c0_i32 = arith.constant 0 : i32
    %0 = arith.cmpi eq, %arg1, %c0_i32 : i32
    %1 = arith.extui %0 : i1 to i32
    %c0_i32_0 = arith.constant 0 : i32
    %2 = arith.cmpi ne, %1, %c0_i32_0 : i32
    scf.if %2 {
      %cst_10 = arith.constant 0xFF800000 : f32
      %18 = vector.broadcast %cst_10 : f32 to vector<8x1xf32>
      %c0_11 = arith.constant 0 : index
      %c0_12 = arith.constant 0 : index
      %19 = vector.load %arg6[%c0_11, %c0_12] : memref<8x1xf32, #tpu.memory_space<vmem>>, vector<8x1xf32>
      tpu.vector_store %arg6[%c0_11, %c0_12], %18 {strides = array<i32>} : memref<8x1xf32, #tpu.memory_space<vmem>>, vector<8x1xf32>,
      %cst_13 = arith.constant 0.000000e+00 : f32
      %20 = vector.broadcast %cst_13 : f32 to vector<8x1xf32>
      %c0_14 = arith.constant 0 : index
      %c0_15 = arith.constant 0 : index
      %21 = vector.load %arg7[%c0_14, %c0_15] : memref<8x1xf32, #tpu.memory_space<vmem>>, vector<8x1xf32>
      tpu.vector_store %arg7[%c0_14, %c0_15], %20 {strides = array<i32>} : memref<8x1xf32, #tpu.memory_space<vmem>>, vector<8x1xf32>,
    } else {
    }
    %c0 = arith.constant 0 : index
    %c0_1 = arith.constant 0 : index
    %3 = vector.load %arg2[%c0, %c0_1] : memref<8x32xf32, #tpu.memory_space<vmem>>, vector<8x32xf32>
    %c0_2 = arith.constant 0 : index
    %c0_3 = arith.constant 0 : index
    %4 = vector.load %arg3[%c0_2, %c0_3] : memref<32x128xf32, #tpu.memory_space<vmem>>, vector<32x128xf32>
    %cst = arith.constant dense<0.000000e+00> : vector<8x128xf32>
    %5 = tpu.matmul %3, %4, %cst {dimension_numbers = #tpu.dot_dimension_numbers<[1], [0], [0], [1], [0, 0, 1, 1], [], []>} : vector<8x32xf32>, vector<32x128xf32>, vector<8x128xf32> -> vector<8x128xf32>
    %c0_4 = arith.constant 0 : index
    %c0_5 = arith.constant 0 : index
    %6 = vector.load %arg4[%c0_4, %c0_5] : memref<1x128xf32, #tpu.memory_space<vmem>>, vector<1x128xf32>
    %7 = vector.broadcast %6 : vector<1x128xf32> to vector<8x128xf32>
    %8 = arith.addf %5, %7 : vector<8x128xf32>
    %c3_i32 = arith.constant 3 : i32
    %9 = arith.cmpi slt, %arg1, %c3_i32 : i32
    %10 = arith.extui %9 : i1 to i32
    %c0_i32_6 = arith.constant 0 : i32
    %11 = arith.cmpi ne, %10, %c0_i32_6 : i32
    scf.if %11 {
      %c0_10 = arith.constant 0 : index
      %c0_11 = arith.constant 0 : index
      %18 = vector.load %arg6[%c0_10, %c0_11] : memref<8x1xf32, #tpu.memory_space<vmem>>, vector<8x1xf32>
      %cst_12 = arith.constant dense<0xFF800000> : vector<8xf32>
      %19 = vector.multi_reduction <maximumf>, %8, %cst_12 [1] : vector<8x128xf32> to vector<8xf32>
      %20 = vector.shape_cast %19 : vector<8xf32> to vector<8x1xf32>
      %21 = arith.maximumf %18, %20 : vector<8x1xf32>
      %c0_13 = arith.constant 0 : index
      %c0_14 = arith.constant 0 : index
      %22 = vector.load %arg7[%c0_13, %c0_14] : memref<8x1xf32, #tpu.memory_space<vmem>>, vector<8x1xf32>
      %23 = arith.subf %18, %21 : vector<8x1xf32>
      %24 = math.exp %23 : vector<8x1xf32>
      %25 = arith.mulf %22, %24 : vector<8x1xf32>
      %26 = vector.broadcast %21 : vector<8x1xf32> to vector<8x128xf32>
      %27 = arith.subf %8, %26 : vector<8x128xf32>
      %28 = math.exp %27 : vector<8x128xf32>
      %cst_15 = arith.constant dense<0.000000e+00> : vector<8xf32>
      %29 = vector.multi_reduction <add>, %28, %cst_15 [1] : vector<8x128xf32> to vector<8xf32>
      %30 = vector.shape_cast %29 : vector<8xf32> to vector<8x1xf32>
      %31 = arith.addf %25, %30 : vector<8x1xf32>
      %c0_16 = arith.constant 0 : index
      %c0_17 = arith.constant 0 : index
      %32 = vector.load %arg7[%c0_16, %c0_17] : memref<8x1xf32, #tpu.memory_space<vmem>>, vector<8x1xf32>
      tpu.vector_store %arg7[%c0_16, %c0_17], %31 {strides = array<i32>} : memref<8x1xf32, #tpu.memory_space<vmem>>, vector<8x1xf32>,
      %c0_18 = arith.constant 0 : index
      %c0_19 = arith.constant 0 : index
      %33 = vector.load %arg6[%c0_18, %c0_19] : memref<8x1xf32, #tpu.memory_space<vmem>>, vector<8x1xf32>
      tpu.vector_store %arg6[%c0_18, %c0_19], %21 {strides = array<i32>} : memref<8x1xf32, #tpu.memory_space<vmem>>, vector<8x1xf32>,
    } else {
    }
    %c2_i32 = arith.constant 2 : i32
    %12 = arith.cmpi eq, %arg1, %c2_i32 : i32
    %13 = arith.extui %12 : i1 to i32
    %c0_i32_7 = arith.constant 0 : i32
    %14 = arith.cmpi ne, %13, %c0_i32_7 : i32
    scf.if %14 {
      %c0_10 = arith.constant 0 : index
      %c0_11 = arith.constant 0 : index
      %18 = vector.load %arg6[%c0_10, %c0_11] : memref<8x1xf32, #tpu.memory_space<vmem>>, vector<8x1xf32>
      %c0_12 = arith.constant 0 : index
      %c0_13 = arith.constant 0 : index
      %19 = vector.load %arg7[%c0_12, %c0_13] : memref<8x1xf32, #tpu.memory_space<vmem>>, vector<8x1xf32>
      %20 = math.log %19 : vector<8x1xf32>
      %21 = arith.addf %18, %20 : vector<8x1xf32>
      %c0_14 = arith.constant 0 : index
      %c0_15 = arith.constant 0 : index
      %22 = vector.load %arg6[%c0_14, %c0_15] : memref<8x1xf32, #tpu.memory_space<vmem>>, vector<8x1xf32>
      tpu.vector_store %arg6[%c0_14, %c0_15], %21 {strides = array<i32>} : memref<8x1xf32, #tpu.memory_space<vmem>>, vector<8x1xf32>,
    } else {
    }
    %c3_i32_8 = arith.constant 3 : i32
    %15 = arith.cmpi sge, %arg1, %c3_i32_8 : i32
    %16 = arith.extui %15 : i1 to i32
    %c0_i32_9 = arith.constant 0 : i32
    %17 = arith.cmpi ne, %16, %c0_i32_9 : i32
    scf.if %17 {
      %c0_10 = arith.constant 0 : index
      %c0_11 = arith.constant 0 : index
      %18 = vector.load %arg6[%c0_10, %c0_11] : memref<8x1xf32, #tpu.memory_space<vmem>>, vector<8x1xf32>
      %19 = vector.broadcast %18 : vector<8x1xf32> to vector<8x128xf32>
      %20 = arith.subf %8, %19 : vector<8x128xf32>
      %c0_12 = arith.constant 0 : index
      %c0_13 = arith.constant 0 : index
      %21 = vector.load %arg5[%c0_12, %c0_13] : memref<8x128xf32, #tpu.memory_space<vmem>>, vector<8x128xf32>
      tpu.vector_store %arg5[%c0_12, %c0_13], %20 {strides = array<i32>} : memref<8x128xf32, #tpu.memory_space<vmem>>, vector<8x128xf32>,
    } else {
    }
    return
  }
  func.func @transform_0(%arg0: i32, %arg1: i32) -> (i32, i32) {
    %c0_i32 = arith.constant 0 : i32
    %c0_i32_0 = arith.constant 0 : i32
    return %arg0, %c0_i32 : i32, i32
  }
  func.func @transform_1(%arg0: i32, %arg1: i32) -> (i32, i32) {
    %c3_i32 = arith.constant 3 : i32
    %0 = arith.cmpi slt, %arg1, %c3_i32 : i32
    %c3_i32_0 = arith.constant 3 : i32
    %1 = arith.subi %arg1, %c3_i32_0 : i32
    %2 = arith.select %0, %arg1, %1 : i32
    %c0_i32 = arith.constant 0 : i32
    %c0_i32_1 = arith.constant 0 : i32
    return %c0_i32, %2 : i32, i32
  }
  func.func @transform_2(%arg0: i32, %arg1: i32) -> (i32, i32) {
    %c3_i32 = arith.constant 3 : i32
    %0 = arith.cmpi slt, %arg1, %c3_i32 : i32
    %c3_i32_0 = arith.constant 3 : i32
    %1 = arith.subi %arg1, %c3_i32_0 : i32
    %2 = arith.select %0, %arg1, %1 : i32
    %c0_i32 = arith.constant 0 : i32
    %c0_i32_1 = arith.constant 0 : i32
    return %c0_i32, %2 : i32, i32
  }
  func.func @transform_3(%arg0: i32, %arg1: i32) -> (i32, i32) {
    %c3_i32 = arith.constant 3 : i32
    %0 = arith.cmpi slt, %arg1, %c3_i32 : i32
    %c3_i32_0 = arith.constant 3 : i32
    %1 = arith.subi %arg1, %c3_i32_0 : i32
    %c0_i32 = arith.constant 0 : i32
    %2 = arith.select %0, %c0_i32, %1 : i32
    %c0_i32_1 = arith.constant 0 : i32
    return %arg0, %2 : i32, i32
  }
}

</mosaic_0001>

<llo_original>
// kernel: tpu_custom_call.1
$region0: #{tpu_custom_call.1}
  #allocation0 [shape = 'u32[]', space=smem, size = 0x4, offset = 0x4, fixed_abs, tag = 'smem constant byte address 0x4 - core index']
  #allocation1 [shape = 'u32[144,128]{1,0:T(1,128)}', space=vmem, size = 0x12000, scoped, tag = 'internal scratch']
  #allocation2 [shape = 'f32[8,1]{1,0:T(8,128)}', space=vmem, size = 0x1000, scoped, tag = 'scratch operand']
  #allocation3 [shape = 'f32[8,1]{1,0:T(8,128)}', space=vmem, size = 0x1000, scoped, tag = 'scratch operand']
  %s0 = inlined_call_operand.hbm [shape: f32[8,32], index: 0, kind: input, shape index: {}]
  %s1 = inlined_call_operand.hbm [shape: f32[32,384], index: 1, kind: input, shape index: {}]
  %s2 = inlined_call_operand.vmem [shape: f32[1,384], index: 2, kind: input, shape index: {}]
  %s3 = inlined_call_operand.hbm [shape: f32[8,384], index: 3, kind: output, shape index: {}]
  %s4 = sld [smem:[#allocation0]]
  $region69: #{tpu_custom_call.1} parent=0
    _
  %s6 = ssub.s32 1, %s4
  %s7 = scalar_select 0, %s6, %s4
  $region1: #{tpu_custom_call.1} parent=0
    #allocation4 [shape = 'u8[4096]{0}', space=vmem, size = 0x1000, scoped, tag = 'input window, operand 0, single buffered']
    #allocation5 [shape = 's32[2]{0}', space=sflag, size = 0x8, scoped, tag = 'scoped memory for tpu_custom_call.1']
    #allocation6 [shape = 's32[2]{0}', space=sflag, size = 0x8, scoped, tag = 'scoped memory for tpu_custom_call.1']
    #allocation7 [shape = 'u8[32768]{0}', space=vmem, size = 0x8000, scoped, tag = 'input window, operand 1']
    #allocation8 [shape = 's32[2]{0}', space=sflag, size = 0x8, scoped, tag = 'scoped memory for tpu_custom_call.1']
    #allocation9 [shape = 'u8[8192]{0}', space=vmem, size = 0x2000, scoped, tag = 'output window, operand 0']
    %8 = vsyncpa [#allocation5], 0
    %9 = vsyncpa [#allocation8], 0
    %s10 = scalar_lea.sflag [#allocation8], 1
    %11 = vsyncpa %s10, 0
    %12 = vsyncpa [#allocation6], 0
    %s13 = scalar_lea.sflag [#allocation6], 1
    %14 = vsyncpa %s13, 0
    loop: start=0, step=1, limit=8
    $region2: #{tpu_custom_call.1} parent=1 // loop_pre_header
      _
    $region3: #{tpu_custom_call.1} parent=1 // loop_header
      %s16 = sphi 0, %s20
      %p17 = scmp.ge.s32.totalorder %s16, 8
      %s23 = sphi 0, %s35
      %s24 = sphi 0, %s31
      %s25 = sphi 0, %s23
      %s26 = sphi 0, %s24
      %s27 = sphi 0, %s25
      %s28 = sphi 0, %s26
      %s38 = sphi 0, %s40
      %s41 = sphi 0, %s38
      %s42 = sphi 0, %s41
      %s58 = sphi 0, %s42
      %s70 = sphi 0, %s72
      %s73 = sphi 0, %s70
      %s74 = sphi 0, %s73
      %s90 = sphi 0, %s74
      %s102 = sphi 0, %s104
      %s105 = sphi 0, %s102
      %s106 = sphi 0, %s105
      %s122 = sphi 0, %s106
      %s136 = sphi 0, %s138
      %s139 = sphi 0, %s136
      %s140 = sphi 0, %s139
      %s156 = sphi 0, %s140
    $region4: #{tpu_custom_call.1} parent=1 // loop_header_branch
      %19 = sbr.rel (%p17) target = $region8
    $region5: #{tpu_custom_call.1} parent=1 // loop_body
      %s21 = ssub.s32 %s16, 1
      %s22 = ssub.s32 %s16, 2
      %s29 = sadd.s32 1, %s24
      %p30 = scmp.ge.s32.totalorder %s29, 6
      %s31 = scalar_select %p30, 0, %s29
      %s32 = sadd.s32 1, %s23
      %s33 = scalar_select %p30, %s32, %s23
      %p34 = scmp.ge.s32.totalorder %s33, 1
      %s35 = scalar_select %p34, 0, %s33
      %s36 = ssub.s32 %s23, %s35
      %p37 = scmp.eq.s32.totalorder %s36, 0
      %s39 = sadd.s32 %s38, 1
      %s40 = scalar_select %p37, %s38, %s39
      %p43 = pneg %p37
      %p44 = scmp.eq.s32.totalorder %s16, 5
      %p45 = por %p43, %p44
      %p46 = scmp.ne.s32.totalorder %s38, %s41
      %p47 = scmp.eq.s32.totalorder %s16, 0
      %p48 = por %p46, %p47
      %p49 = scmp.ne.s32.totalorder %s38, %s41
      %p50 = scmp.eq.s32.totalorder %s21, 5
      %p51 = por %p49, %p50
      %p52 = scmp.ne.s32.totalorder %s41, %s42
      %p53 = scmp.eq.s32.totalorder %s21, 0
      %p54 = por %p52, %p53
      %p55 = scmp.ne.s32.totalorder %s41, %s42
      %p56 = scmp.eq.s32.totalorder %s22, 5
      %p57 = por %p55, %p56
      %p59 = scmp.ne.s32.totalorder %s42, %s58
      %p60 = scmp.eq.s32.totalorder %s22, 0
      %p61 = por %p59, %p60
      %p62 = scmp.lt.s32.totalorder %s24, 3
      %s63 = ssub.s32 %s24, 3
      %s64 = scalar_select %p62, %s24, %s63
      %p65 = scmp.lt.s32.totalorder %s31, 3
      %s66 = ssub.s32 %s31, 3
      %s67 = scalar_select %p65, %s31, %s66
      %s68 = ssub.s32 %s64, %s67
      %p69 = scmp.eq.s32.totalorder %s68, 0
      %s71 = sadd.s32 %s70, 1
      %s72 = scalar_select %p69, %s70, %s71
      %p75 = pneg %p69
      %p76 = scmp.eq.s32.totalorder %s16, 5
      %p77 = por %p75, %p76
      %p78 = scmp.ne.s32.totalorder %s70, %s73
      %p79 = scmp.eq.s32.totalorder %s16, 0
      %p80 = por %p78, %p79
      %p81 = scmp.ne.s32.totalorder %s70, %s73
      %p82 = scmp.eq.s32.totalorder %s21, 5
      %p83 = por %p81, %p82
      %p84 = scmp.ne.s32.totalorder %s73, %s74
      %p85 = scmp.eq.s32.totalorder %s21, 0
      %p86 = por %p84, %p85
      %p87 = scmp.ne.s32.totalorder %s73, %s74
      %p88 = scmp.eq.s32.totalorder %s22, 5
      %p89 = por %p87, %p88
      %p91 = scmp.ne.s32.totalorder %s74, %s90
      %p92 = scmp.eq.s32.totalorder %s22, 0
      %p93 = por %p91, %p92
      %p94 = scmp.lt.s32.totalorder %s24, 3
      %s95 = ssub.s32 %s24, 3
      %s96 = scalar_select %p94, %s24, %s95
      %p97 = scmp.lt.s32.totalorder %s31, 3
      %s98 = ssub.s32 %s31, 3
      %s99 = scalar_select %p97, %s31, %s98
      %s100 = ssub.s32 %s96, %s99
      %p101 = scmp.eq.s32.totalorder %s100, 0
      %s103 = sadd.s32 %s102, 1
      %s104 = scalar_select %p101, %s102, %s103
      %p107 = pneg %p101
      %p108 = scmp.eq.s32.totalorder %s16, 5
      %p109 = por %p107, %p108
      %p110 = scmp.ne.s32.totalorder %s102, %s105
      %p111 = scmp.eq.s32.totalorder %s16, 0
      %p112 = por %p110, %p111
      %p113 = scmp.ne.s32.totalorder %s102, %s105
      %p114 = scmp.eq.s32.totalorder %s21, 5
      %p115 = por %p113, %p114
      %p116 = scmp.ne.s32.totalorder %s105, %s106
      %p117 = scmp.eq.s32.totalorder %s21, 0
      %p118 = por %p116, %p117
      %p119 = scmp.ne.s32.totalorder %s105, %s106
      %p120 = scmp.eq.s32.totalorder %s22, 5
      %p121 = por %p119, %p120
      %p123 = scmp.ne.s32.totalorder %s106, %s122
      %p124 = scmp.eq.s32.totalorder %s22, 0
      %p125 = por %p123, %p124
      %p126 = scmp.lt.s32.totalorder %s24, 3
      %s127 = ssub.s32 %s24, 3
      %s128 = scalar_select %p126, 0, %s127
      %p129 = scmp.lt.s32.totalorder %s31, 3
      %s130 = ssub.s32 %s31, 3
      %s131 = scalar_select %p129, 0, %s130
      %s132 = ssub.s32 %s23, %s35
      %s133 = ssub.s32 %s128, %s131
      %s134 = sor.u32 %s132, %s133
      %p135 = scmp.eq.s32.totalorder %s134, 0
      %s137 = sadd.s32 %s136, 1
      %s138 = scalar_select %p135, %s136, %s137
      %p141 = pneg %p135
      %p142 = scmp.eq.s32.totalorder %s16, 5
      %p143 = por %p141, %p142
      %p144 = scmp.ne.s32.totalorder %s136, %s139
      %p145 = scmp.eq.s32.totalorder %s16, 0
      %p146 = por %p144, %p145
      %p147 = scmp.ne.s32.totalorder %s136, %s139
      %p148 = scmp.eq.s32.totalorder %s21, 5
      %p149 = por %p147, %p148
      %p150 = scmp.ne.s32.totalorder %s139, %s140
      %p151 = scmp.eq.s32.totalorder %s21, 0
      %p152 = por %p150, %p151
      %p153 = scmp.ne.s32.totalorder %s139, %s140
      %p154 = scmp.eq.s32.totalorder %s22, 5
      %p155 = por %p153, %p154
      %p157 = scmp.ne.s32.totalorder %s140, %s156
      %p158 = scmp.eq.s32.totalorder %s22, 0
      %p159 = por %p157, %p158
      %p160 = scmp.le.s32.totalorder 1, %s16
      %p161 = scmp.lt.s32.totalorder %s16, 7
      %p162 = pnand %p160, %p161
      %p163 = pneg %p162
      // Predicated region
      $region9: #{tpu_custom_call.1} parent=5 // pred_check
        _
      $region10: #{tpu_custom_call.1} parent=5 // pred_check_branch
        %165 = sbr.rel (%p162) target = $region12
      $region11: #{tpu_custom_call.1} parent=5 // pred_region
        %s166 = ssub.s32 %s16, 1
        // Predicated region
        $region13: #{tpu_custom_call.1} parent=11 // pred_check
          %p167 = pneg %p54
        $region14: #{tpu_custom_call.1} parent=11 // pred_check_branch
          %169 = sbr.rel (%p167) target = $region16
        $region15: #{tpu_custom_call.1} parent=11 // pred_region
          %s171 = ssub.s32 128, 128
          %172 = vsyncadd [#allocation5], %s171
          %s173 = smul.addr %s25, 128
          %s174 = scalar_lea.hbm %s0, %s173
          %s176 = sshll.u32 [#allocation4], 4
          %s177 = int_to_ptr.vmem [resolvable:$true] %s176
          %179 = dma.hbm_to_vmem [thread:$0]  %s174, 128, %s177, [#allocation5]
        $region16: #{tpu_custom_call.1} parent=11 // pred_fallthru
          _
      $region12: #{tpu_custom_call.1} parent=5 // pred_fallthru
        _
      %p180 = scmp.lt.s32.totalorder %s16, 6
      // Predicated region
      $region17: #{tpu_custom_call.1} parent=5 // pred_check
        %p181 = pneg %p180
      $region18: #{tpu_custom_call.1} parent=5 // pred_check_branch
        %183 = sbr.rel (%p181) target = $region20
      $region19: #{tpu_custom_call.1} parent=5 // pred_region
        // Predicated region
        $region21: #{tpu_custom_call.1} parent=19 // pred_check
          %p184 = pneg %p80
        $region22: #{tpu_custom_call.1} parent=19 // pred_check_branch
          %186 = sbr.rel (%p184) target = $region24
        $region23: #{tpu_custom_call.1} parent=19 // pred_region
          %s187 = sand.u32 %s70, 1
          %s188 = scalar_lea.sflag [#allocation8], %s187
          %s189 = sand.u32 %s70, 1
          %s190 = smul.addr %s189, 32
          %s191 = scalar_lea.vmem [#allocation7], %s190
          %p192 = scmp.lt.s32.totalorder %s24, 3
          %s193 = ssub.s32 %s24, 3
          %s194 = scalar_select %p192, %s24, %s193
          %s196 = ssub.s32 512, 512
          %197 = vsyncadd %s188, %s196
          %s198 = smul.addr %s194, 128
          %s199 = scalar_lea.hbm %s1, %s198
          %s200 = sshll.u32 %s191, 4
          %s201 = int_to_ptr.vmem [resolvable:$true] %s200
          %206 = dma.hbm_to_vmem [thread:$0]  %s199, 512, %s201, %s188, 384, 128, 8
        $region24: #{tpu_custom_call.1} parent=19 // pred_fallthru
          _
        // Predicated region
        $region25: #{tpu_custom_call.1} parent=19 // pred_check
          %p207 = pneg %p112
        $region26: #{tpu_custom_call.1} parent=19 // pred_check_branch
          %209 = sbr.rel (%p207) target = $region28
        $region27: #{tpu_custom_call.1} parent=19 // pred_region
          %p210 = scmp.lt.s32.totalorder %s24, 3
          %s211 = ssub.s32 %s24, 3
          %s212 = scalar_select %p210, %s24, %s211
          %p213 = scmp.lt.s32.totalorder %s212, 2
          %s214 = scalar_select %p213, %s212, 2
          %s215 = scalar_lea.vmem %s2, %s214
          %p216 = scmp.lt.s32.totalorder %s24, 3
          %s217 = ssub.s32 %s24, 3
          %s218 = scalar_select %p216, %s24, %s217
        $region28: #{tpu_custom_call.1} parent=19 // pred_fallthru
          _
      $region20: #{tpu_custom_call.1} parent=5 // pred_fallthru
        _
      %p219 = scmp.le.s32.totalorder 1, %s16
      %p220 = scmp.lt.s32.totalorder %s16, 7
      %p221 = pnand %p219, %p220
      %p222 = pneg %p221
      // Predicated region
      $region29: #{tpu_custom_call.1} parent=5 // pred_check
        _
      $region30: #{tpu_custom_call.1} parent=5 // pred_check_branch
        %224 = sbr.rel (%p221) target = $region32
      $region31: #{tpu_custom_call.1} parent=5 // pred_region
        %s225 = ssub.s32 %s16, 1
        // Predicated region
        $region33: #{tpu_custom_call.1} parent=31 // pred_check
          %p226 = pneg %p54
        $region34: #{tpu_custom_call.1} parent=31 // pred_check_branch
          %228 = sbr.rel (%p226) target = $region36
        $region35: #{tpu_custom_call.1} parent=31 // pred_region
          %229 = dma.done [#allocation5], 128
        $region36: #{tpu_custom_call.1} parent=31 // pred_fallthru
          _
        %s230 = sand.u32 %s73, 1
        %s231 = scalar_lea.sflag [#allocation8], %s230
        %s232 = sand.u32 %s73, 1
        %s233 = smul.addr %s232, 32
        %s234 = scalar_lea.vmem [#allocation7], %s233
        // Predicated region
        $region37: #{tpu_custom_call.1} parent=31 // pred_check
          %p235 = pneg %p86
        $region38: #{tpu_custom_call.1} parent=31 // pred_check_branch
          %237 = sbr.rel (%p235) target = $region40
        $region39: #{tpu_custom_call.1} parent=31 // pred_region
          %238 = dma.done %s231, 512
        $region40: #{tpu_custom_call.1} parent=31 // pred_fallthru
          _
        %p239 = pneg %p54
        %p240 = pneg %p51
        %s241 = sand.u32 %s73, 1
        %s242 = scalar_lea.sflag [#allocation8], %s241
        %s243 = sand.u32 %s73, 1
        %s244 = smul.addr %s243, 32
        %s245 = scalar_lea.vmem [#allocation7], %s244
        %p246 = pneg %p86
        %p247 = pneg %p83
        %p248 = scmp.lt.s32.totalorder %s26, 3
        %s249 = ssub.s32 %s26, 3
        %s250 = scalar_select %p248, %s26, %s249
        %p251 = scmp.lt.s32.totalorder %s250, 2
        %s252 = scalar_select %p251, %s250, 2
        %s253 = scalar_lea.vmem %s2, %s252
        %p254 = pneg %p118
        %p255 = pneg %p115
        %p256 = pneg %p152
        %p257 = pneg %p149
        %s258 = sand.u32 %s139, 1
        %s259 = scalar_lea.sflag [#allocation6], %s258
        %s260 = sand.u32 %s139, 1
        %s261 = smul.addr %s260, 8
        %s262 = scalar_lea.vmem [#allocation9], %s261
        %p263 = scmp.lt.s32.totalorder %s26, 3
        %s264 = ssub.s32 %s26, 3
        %s265 = scalar_select %p263, %s26, %s264
        %p266 = scmp.lt.s32.totalorder %s26, 3
        %s267 = ssub.s32 %s26, 3
        %s268 = scalar_select %p266, %s26, %s267
        %p269 = scmp.lt.s32.totalorder %s268, 2
        %s270 = scalar_select %p269, %s268, 2
        %s271 = scalar_lea.vmem %s2, %s270
        %p272 = scmp.lt.s32.totalorder %s26, 3
        %s273 = ssub.s32 %s26, 3
        %s274 = scalar_select %p272, %s26, %s273
        %p275 = scmp.lt.s32.totalorder %s26, 3
        %s276 = ssub.s32 %s26, 3
        %s277 = scalar_select %p275, 0, %s276
        %p278 = scmp.eq.s32.totalorder %s26, 0
        // Predicated region
        $region41: #{tpu_custom_call.1} parent=31 // pred_check
          %p279 = pneg %p278
        $region42: #{tpu_custom_call.1} parent=31 // pred_check_branch
          %281 = sbr.rel (%p279) target = $region44
        $region43: #{tpu_custom_call.1} parent=31 // pred_region
          %vm282 = vcmask 7168
          %283 = vst.msk [vmem:[#allocation2] sm:$0xff] %vm282, -inf
          %284 = vst.msk [vmem:[#allocation3] sm:$0xff] %vm282, 0.0
        $region44: #{tpu_custom_call.1} parent=31 // pred_fallthru
          _
        %v285 = vld [vmem:[#allocation4] sm:$0xff]
        %v286 = vld [vmem:[%s234] sm:$0xff]
        %v287 = vld [vmem:[%s234 + $0x8] sm:$0xff]
        %v288 = vld [vmem:[%s234 + $0x10] sm:$0xff]
        %v289 = vld [vmem:[%s234 + $0x18] sm:$0xff]
        %v290 = vld [vmem:[%s271] sm:$0x1]
        %v292 = vlaneseq
        %v293 = vshrl.u32 %v292, 7
        %v294 = vsub.s32 0, %v293
        %v295 = vrot.slane %v290, %v294
        %vm297 = vcmask 261120
        %v299 = vsel %vm297, %v285, 0
        %301 = vmatprep.subr.mxu0 0.0
        %302 = vmatpush1.msra.mxu0 %v286
        %303 = vmatprep.subr.mxu0 0.0
        %304 = vmatpush1.msra.mxu0 %v287
        %305 = vmatprep.subr.mxu0 0.0
        %306 = vmatpush1.msra.mxu0 %v288
        %307 = vmatprep.subr.mxu0 0.0
        %308 = vmatpush1.msra.mxu0 %v289
        %309 = vmatprep.subr.mxu0 0.0
        %310 = vmatpush1.msra.mxu0 0.0
        %311 = vmatprep.subr.mxu0 0.0
        %312 = vmatpush1.msra.mxu0 0.0
        %313 = vmatprep.subr.mxu0 0.0
        %314 = vmatpush1.msra.mxu0 0.0
        %315 = vmatprep.subr.mxu0 0.0
        %316 = vmatpush1.msra.mxu0 0.0
        %317 = vmatprep.subr.mxu0 0.0
        %318 = vmatpush1.msra.mxu0 0.0
        %319 = vmatprep.subr.mxu0 0.0
        %320 = vmatpush1.msra.mxu0 0.0
        %321 = vmatprep.subr.mxu0 0.0
        %322 = vmatpush1.msra.mxu0 0.0
        %323 = vmatprep.subr.mxu0 0.0
        %324 = vmatpush1.msra.mxu0 0.0
        %325 = vmatprep.subr.mxu0 0.0
        %326 = vmatpush1.msra.mxu0 0.0
        %327 = vmatprep.subr.mxu0 0.0
        %328 = vmatpush1.msra.mxu0 0.0
        %329 = vmatprep.subr.mxu0 0.0
        %330 = vmatpush1.msra.mxu0 0.0
        %331 = vmatprep.subr.mxu0 0.0
        %332 = vmatpush1.msra.mxu0 0.0
        %333 = vmatprep.subr.mxu0 0.0
        %334 = vmatpush1.msra.mxu0 0.0
        %335 = vmatprep.subr.mxu0 0.0
        %336 = vmatpush1.msra.mxu0 0.0
        %337 = vmatprep.subr.mxu0 0.0
        %338 = vmatpush1.msra.mxu0 0.0
        %339 = vmatprep.subr.mxu0 0.0
        %340 = vmatpush1.msra.mxu0 0.0
        %341 = vmatprep.subr.mxu0 0.0
        %342 = vmatpush1.msra.mxu0 0.0
        %343 = vmatprep.subr.mxu0 0.0
        %344 = vmatpush1.msra.mxu0 0.0
        %345 = vmatprep.subr.mxu0 0.0
        %346 = vmatpush1.msra.mxu0 0.0
        %347 = vmatprep.subr.mxu0 0.0
        %348 = vmatpush1.msra.mxu0 0.0
        %349 = vmatprep.subr.mxu0 0.0
        %350 = vmatpush1.msra.mxu0 0.0
        %351 = vmatprep.subr.mxu0 0.0
        %352 = vmatpush1.msra.mxu0 0.0
        %353 = vmatprep.subr.mxu0 0.0
        %354 = vmatpush1.msra.mxu0 0.0
        %355 = vmatprep.subr.mxu0 0.0
        %356 = vmatpush1.msra.mxu0 0.0
        %357 = vmatprep.subr.mxu0 0.0
        %358 = vmatpush1.msra.mxu0 0.0
        %359 = vmatprep.subr.mxu0 0.0
        %360 = vmatpush1.msra.mxu0 0.0
        %361 = vmatprep.subr.mxu0 0.0
        %362 = vmatpush1.msra.mxu0 0.0
        %363 = vmatprep.subr.mxu0 0.0
        %364 = vmatpush1.msra.mxu0 0.0
        %365 = vmatprep.mubr.f32.mxu0 0.0
        %366 = vmatmul.mubr.f32.gmra.mrb[0].mxu0 %v299
        %v367 = vpop.f32.mrb[0].mxu0
        %v368 = vadd.f32 %v295, %v367
        %v369 = vpop.f32.mrb[0].mxu0
        %370 = vdwg.mxu0
        %p371 = scmp.lt.s32.totalorder %s26, 3
        // Predicated region
        $region45: #{tpu_custom_call.1} parent=31 // pred_check
          %p372 = pneg %p371
        $region46: #{tpu_custom_call.1} parent=31 // pred_check_branch
          %374 = sbr.rel (%p372) target = $region48
        $region47: #{tpu_custom_call.1} parent=31 // pred_region
          %v375 = vld [vmem:[#allocation2] sm:$0xff]
          %376 = vmax.xlane.f32.xlu0 %v368
          %v377 = vpop.xlane.xlu0 %376
          %v378 = vmax.f32 %v375, %v377
          %v379 = vld [vmem:[#allocation3] sm:$0xff]
          %v380 = vsub.f32 %v375, %v378
          %v381 = vmul.f32 %v380, 1.442695
          %v382 = vpow.pop %v381
          %v383 = vmul.f32 %v379, %v382
          %385 = vset.pattern.permute.xlu0 0
          %386 = vperm.xlu0 %385, %v378
          %v387 = vpop.permute.xlu0 %386
          %v389 = vsub.f32 %v368, %v387
          %v390 = vmul.f32 %v389, 1.442695
          %v391 = vpow.pop %v390
          %392 = vadd.xlane.f32.xlu0 %v391
          %v393 = vpop.xlane.xlu0 %392
          %v394 = vadd.f32 %v383, %v393
          %vm395 = vcmask 7168
          %396 = vst.msk [vmem:[#allocation3] sm:$0xff] %vm395, %v394
          %397 = vst.msk [vmem:[#allocation2] sm:$0xff] %vm395, %v378
        $region48: #{tpu_custom_call.1} parent=31 // pred_fallthru
          _
        %p398 = scmp.eq.s32.totalorder %s26, 2
        // Predicated region
        $region49: #{tpu_custom_call.1} parent=31 // pred_check
          %p399 = pneg %p398
        $region50: #{tpu_custom_call.1} parent=31 // pred_check_branch
          %401 = sbr.rel (%p399) target = $region52
        $region51: #{tpu_custom_call.1} parent=31 // pred_region
          %v402 = vld [vmem:[#allocation2] sm:$0xff]
          %v403 = vld [vmem:[#allocation3] sm:$0xff]
          %v404 = vlog2.pop %v403
          %v405 = vmul.f32 %v404, 0.6931472
          %v406 = vadd.f32 %v402, %v405
          %vm407 = vcmask 7168
          %408 = vst.msk [vmem:[#allocation2] sm:$0xff] %vm407, %v406
        $region52: #{tpu_custom_call.1} parent=31 // pred_fallthru
          _
        %p409 = scmp.ge.s32.totalorder %s26, 3
        // Predicated region
        $region53: #{tpu_custom_call.1} parent=31 // pred_check
          %p410 = pneg %p409
        $region54: #{tpu_custom_call.1} parent=31 // pred_check_branch
          %412 = sbr.rel (%p410) target = $region56
        $region55: #{tpu_custom_call.1} parent=31 // pred_region
          %v413 = vld [vmem:[#allocation2] sm:$0xff]
          %415 = vset.pattern.permute.xlu0 0
          %416 = vperm.xlu0 %415, %v413
          %v417 = vpop.permute.xlu0 %416
          %v419 = vsub.f32 %v368, %v417
          %420 = vst [vmem:[%s262] sm:$0xff] %v419
        $region56: #{tpu_custom_call.1} parent=31 // pred_fallthru
          _
        %s421 = sand.u32 %s139, 1
        %s422 = scalar_lea.sflag [#allocation6], %s421
        %s423 = sand.u32 %s139, 1
        %s424 = smul.addr %s423, 8
        %s425 = scalar_lea.vmem [#allocation9], %s424
        // Predicated region
        $region57: #{tpu_custom_call.1} parent=31 // pred_check
          %p426 = pneg %p149
        $region58: #{tpu_custom_call.1} parent=31 // pred_check_branch
          %428 = sbr.rel (%p426) target = $region60
        $region59: #{tpu_custom_call.1} parent=31 // pred_region
          %p429 = scmp.lt.s32.totalorder %s26, 3
          %s430 = ssub.s32 %s26, 3
          %s431 = scalar_select %p429, 0, %s430
          %s433 = ssub.s32 128, 128
          %434 = vsyncadd %s422, %s433
          %s435 = smul.addr %s25, 3
          %s436 = sadd.s32 %s431, %s435
          %s437 = smul.addr %s436, 128
          %s438 = scalar_lea.hbm %s3, %s437
          %s440 = sshll.u32 %s425, 4
          %s441 = int_to_ptr.vmem [resolvable:$true] %s440
          %443 = dma.vmem_to_hbm [thread:$0]  %s441, 128, %s438, %s422
        $region60: #{tpu_custom_call.1} parent=31 // pred_fallthru
          _
      $region32: #{tpu_custom_call.1} parent=5 // pred_fallthru
        _
      %p444 = scmp.le.s32.totalorder 2, %s16
      // Predicated region
      $region61: #{tpu_custom_call.1} parent=5 // pred_check
        %p445 = pneg %p444
      $region62: #{tpu_custom_call.1} parent=5 // pred_check_branch
        %447 = sbr.rel (%p445) target = $region64
      $region63: #{tpu_custom_call.1} parent=5 // pred_region
        %s448 = ssub.s32 %s16, 2
        // Predicated region
        $region65: #{tpu_custom_call.1} parent=63 // pred_check
          %p449 = pneg %p155
        $region66: #{tpu_custom_call.1} parent=63 // pred_check_branch
          %451 = sbr.rel (%p449) target = $region68
        $region67: #{tpu_custom_call.1} parent=63 // pred_region
          %s452 = sand.u32 %s140, 1
          %s453 = scalar_lea.sflag [#allocation6], %s452
          %s454 = sand.u32 %s140, 1
          %s455 = smul.addr %s454, 8
          %s456 = scalar_lea.vmem [#allocation9], %s455
          %457 = dma.done %s453, 128
        $region68: #{tpu_custom_call.1} parent=63 // pred_fallthru
          _
      $region64: #{tpu_custom_call.1} parent=5 // pred_fallthru
        _
    $region6: #{tpu_custom_call.1} parent=1 // loop_footer
      %s20 = sadd.s32 1, %s16
    $region7: #{tpu_custom_call.1} parent=1 // loop_footer_branch
      %15 = sbr.rel target = $region3
    $region8: #{tpu_custom_call.1} parent=1 // loop_exit
      _
    %458 = vsyncpa [#allocation5], 1
    %s459 = scalar_lea.sflag [#allocation5], 1
    %460 = vsyncpa %s459, 1
    %461 = vsyncpa [#allocation8], 1
    %s462 = scalar_lea.sflag [#allocation8], 1
    %463 = vsyncpa %s462, 1
    %464 = vsyncpa [#allocation6], 1
    %s465 = scalar_lea.sflag [#allocation6], 1
    %466 = vsyncpa %s465, 1

</llo_original>
